<compile_context>
chip_gen: v7x
topology: tpu7x:2x2x1
jax: 0.10.0
libtpu: 0.0.40
codegen_flags: <defaults>
</compile_context>

<pallas_src>
import jax
import jax.numpy as jnp
from jax.experimental import pallas as pl
from jax.experimental.pallas import tpu as pltpu

_MiB = 1024 * 1024


# ----------------------------------------------------------------------------
# VMEM budgeting (generation-aware)
# ----------------------------------------------------------------------------
def _vmem_capacity_bytes():
    try:
        return int(pltpu.get_tpu_info().vmem_capacity_bytes)
    except Exception:
        return 64 * _MiB  # conservative fallback (v7x per-TensorCore VMEM)


def _vmem_budget():
    cap = _vmem_capacity_bytes()
    # Scoped limit ~75% of physical VMEM: ~96 MiB on v5e/v6e (128 MiB),
    # ~48 MiB on v7x (64 MiB); never below the 32 MiB default.
    limit = min(cap, max(32 * _MiB, (3 * cap) // 4))
    # Pipeline-footprint target (leaves scheduler / compiler headroom).
    budget = (4 * limit) // 5
    return limit, budget


def _choose_class_block(C, per_class_bytes, resident_bytes, budget_bytes):
    cb = (budget_bytes - resident_bytes) // max(per_class_bytes, 1)
    cb = max(1, min(C, int(cb)))
    if C > 1:
        # Keep at least 2 grid steps so dimension_semantics=('parallel',) can
        # shard across both v7x TensorCores; costs ~0.35us on 1-TC chips.
        cb = min(cb, -(-C // 2))
    return cb


# ----------------------------------------------------------------------------
# Kernel 1: full prompt assembly (used once at init / as the plain forward)
# ----------------------------------------------------------------------------
def _assemble_kernel(prefix_ref, ctx_ref, suffix_ref, out_ref):
    # prefix_ref : (CB, 1,     D)   -- SOS token embeddings (frozen)
    # ctx_ref    : (1|CB, n_ctx, D) -- learnable context (shared or CSC)
    # suffix_ref : (CB, s_suf, D)   -- class-name + EOS + pad embeddings (frozen)
    # out_ref    : (CB, L,     D)
    # Direct region stores: no full-width concat temp (the only intermediate is
    # the (CB, n_ctx, D) ctx region); misaligned partial stores are masked vst's
    # hidden under the HBM DMA.
    dt = out_ref.dtype
    cb, _, d = out_ref.shape
    n_ctx = ctx_ref.shape[1]
    out_ref[:, 0:1, :] = prefix_ref[...].astype(dt)
    ctx = ctx_ref[...]
    if ctx.dtype != dt:
        ctx = ctx.astype(dt)
    out_ref[:, 1:1 + n_ctx, :] = jnp.broadcast_to(ctx, (cb, n_ctx, d))
    out_ref[:, 1 + n_ctx:, :] = suffix_ref[...].astype(dt)


def assemble_prompts(token_prefix, context, token_suffix, *, class_block=None):
    """Full concat: prompts = [prefix | context | suffix] along seq.  One-time init
    (or standalone forward); the per-training-step path is update_context_rows."""
    C, _, D = token_prefix.shape
    csc = context.ndim == 3
    n_ctx = context.shape[1] if csc else context.shape[0]
    s_suf = token_suffix.shape[1]
    seq_len = 1 + n_ctx + s_suf
    dtype = token_prefix.dtype
    isz = jnp.dtype(dtype).itemsize
    ctx_isz = jnp.dtype(context.dtype).itemsize

    vmem_limit, budget = _vmem_budget()
    in_rows = 1 + s_suf + (n_ctx if csc else 0)       # streamed input rows per class
    per_class = (2 * in_rows + 2 * seq_len + n_ctx) * D * isz  # 2x double-buffering + ctx temp
    resident = 0 if csc else 2 * n_ctx * D * ctx_isz  # shared ctx kept resident
    if class_block is None:
        cb = _choose_class_block(C, per_class, resident, budget)
    else:
        cb = class_block
    cb = max(1, min(C, cb))
    grid = (pl.cdiv(C, cb),)

    if csc:
        ctx3 = context
        ctx_spec = pl.BlockSpec((cb, n_ctx, D), lambda i: (i, 0, 0))
    else:
        ctx3 = context.reshape(1, n_ctx, D)
        # Constant block index: the shared context block is DMA'd once and kept
        # resident; the pipeline does not re-fetch it on later grid steps.
        ctx_spec = pl.BlockSpec((1, n_ctx, D), lambda i: (0, 0, 0))

    return pl.pallas_call(
        _assemble_kernel,
        out_shape=jax.ShapeDtypeStruct((C, seq_len, D), dtype),
        grid=grid,
        in_specs=[
            pl.BlockSpec((cb, 1, D), lambda i: (i, 0, 0)),
            ctx_spec,
            pl.BlockSpec((cb, s_suf, D), lambda i: (i, 0, 0)),
        ],
        out_specs=pl.BlockSpec((cb, seq_len, D), lambda i: (i, 0, 0)),
        compiler_params=pltpu.CompilerParams(
            dimension_semantics=("parallel",),
            vmem_limit_bytes=vmem_limit),
    )(token_prefix, ctx3, token_suffix)


# ----------------------------------------------------------------------------
# Kernel 2: per-step fast path -- write only the n_ctx context rows into a
# persistent prompts buffer (aliased in/out), via strided VMEM->HBM DMA.
# ----------------------------------------------------------------------------
def _make_ctx_update_kernel(C, cb, n_ctx, csc):
    def kernel(prompts_in_ref, ctx_ref, prompts_out_ref, *scratch):
        # prompts_in_ref is only here to carry the aliased HBM buffer (frozen
        # rows already correct); never read.
        del prompts_in_ref
        i = pl.program_id(0)
        # Clamp the last (possibly partial) class block; overlapping rows are
        # rewritten with identical data (idempotent).
        c0 = jnp.minimum(i * cb, C - cb)
        if csc:
            ctx_buf, slab, in_sem, out_sem = scratch
            ld = pltpu.make_async_copy(ctx_ref.at[pl.ds(c0, cb)], ctx_buf, in_sem)
            ld.start()
            ld.wait()
            slab[...] = ctx_buf[...].astype(slab.dtype)
        else:
            slab, out_sem = scratch
            # Shared context: resident (1, n_ctx, D) VMEM tile, broadcast to the
            # class block in VMEM (cheap VPU work, << HBM DMA time).
            slab[...] = jnp.broadcast_to(ctx_ref[...].astype(slab.dtype), slab.shape)
        st = pltpu.make_async_copy(
            slab, prompts_out_ref.at[pl.ds(c0, cb), pl.ds(1, n_ctx)], out_sem)
        st.start()
        st.wait()
        # TODO(synk): double-buffer the outgoing DMA across grid steps (and DMA
        # HBM->HBM directly when ctx.dtype == prompts.dtype) to overlap
        # consecutive writes; second-order since HBM traffic is already minimal.
    return kernel


def _update_context_rows_impl(prompts, context):
    C, seq_len, D = prompts.shape
    csc = context.ndim == 3
    n_ctx = context.shape[1] if csc else context.shape[0]
    dtype = prompts.dtype
    isz = jnp.dtype(dtype).itemsize
    ctx_isz = jnp.dtype(context.dtype).itemsize

    vmem_limit, budget = _vmem_budget()
    # Manual (non-pipelined) DMA path: slab + (CSC) staging buffer + temp headroom.
    per_class = n_ctx * D * (2 * isz + (ctx_isz if csc else 0))
    resident = 0 if csc else 2 * n_ctx * D * ctx_isz
    cb = _choose_class_block(C, per_class, resident, budget)
    grid = (pl.cdiv(C, cb),)

    if csc:
        ctx_arg = context
        ctx_spec = pl.BlockSpec(memory_space=pl.ANY)
        scratch_shapes = [
            pltpu.VMEM((cb, n_ctx, D), context.dtype),   # staging (HBM -> VMEM)
            pltpu.VMEM((cb, n_ctx, D), dtype),           # cast slab (VMEM -> HBM)
            pltpu.SemaphoreType.DMA,
            pltpu.SemaphoreType.DMA,
        ]
    else:
        ctx_arg = context.reshape(1, n_ctx, D)
        ctx_spec = pl.BlockSpec((1, n_ctx, D), lambda i: (0, 0, 0))  # resident
        scratch_shapes = [
            pltpu.VMEM((cb, n_ctx, D), dtype),           # broadcast slab
            pltpu.SemaphoreType.DMA,
        ]

    kernel = _make_ctx_update_kernel(C, cb, n_ctx, csc)
    return pl.pallas_call(
        kernel,
        out_shape=jax.ShapeDtypeStruct((C, seq_len, D), dtype),
        grid=grid,
        in_specs=[pl.BlockSpec(memory_space=pl.ANY), ctx_spec],
        out_specs=pl.BlockSpec(memory_space=pl.ANY),
        scratch_shapes=scratch_shapes,
        input_output_aliases={0: 0},   # prompts buffer updated in place
        compiler_params=pltpu.CompilerParams(
            dimension_semantics=("parallel",),
            vmem_limit_bytes=vmem_limit),
    )(prompts, ctx_arg)


# jit + donation makes the aliasing a true in-place update of the prompts buffer.
update_context_rows = jax.jit(_update_context_rows_impl, donate_argnums=(0,))


# ----------------------------------------------------------------------------
# Module-level forward
# ----------------------------------------------------------------------------
def prompt_learner_forward(token_prefix, context, token_suffix,
                           class_token_position="end", prompts_buffer=None):
    """PromptLearner.forward equivalent.

    token_prefix : (C, 1, D)       frozen
    context      : (N_CTX, D) shared or (C, N_CTX, D) class-specific, learnable
    token_suffix : (C, S_suf, D)   frozen
    prompts_buffer : optional pre-assembled (C, L, D) buffer whose frozen rows
        are already correct (from assemble_prompts at init). If given, only the
        context rows are rewritten (fast training-step path); the argument is
        donated. Returns (C, 1+N_CTX+S_suf, D) in token_prefix.dtype either way.
    """
    if class_token_position != "end":
        # TODO(synk): 'middle'/'front' positions need per-class ragged slicing
        # driven by label_lengths (data-dependent concat); not implemented here.
        raise NotImplementedError("only class_token_position='end' is supported")
    if prompts_buffer is None:
        return assemble_prompts(token_prefix, context, token_suffix)
    return update_context_rows(prompts_buffer, context)


def reference_forward(token_prefix, context, token_suffix):
    C = token_prefix.shape[0]
    dt = token_prefix.dtype
    if context.ndim == 2:
        context = jnp.broadcast_to(context[None], (C,) + context.shape)
    return jnp.concatenate(
        [token_prefix, context.astype(dt), token_suffix.astype(dt)], axis=1)


if __name__ == "__main__":
    # Small synthetic configuration consistent with the module's shapes:
    #   num_classes=4, N_CTX=4, context_dim=128 (lane-aligned), seq_len=16.
    num_classes = 4
    n_ctx = 4
    context_dim = 128
    seq_len = 16                      # 1 (SOS) + n_ctx + suffix
    suffix_len = seq_len - 1 - n_ctx  # = 11

    key = jax.random.PRNGKey(0)
    k_ctx, k_pre, k_suf, k_new, k_csc, k_pre5, k_suf5, k_new5 = jax.random.split(key, 8)

    # Learnable context: nn.init.normal_(std=0.02); frozen CLIP embedding stand-ins.
    context = 0.02 * jax.random.normal(k_ctx, (n_ctx, context_dim), dtype=jnp.float32)
    token_prefix = jax.random.normal(k_pre, (num_classes, 1, context_dim), dtype=jnp.float32)
    token_suffix = jax.random.normal(k_suf, (num_classes, suffix_len, context_dim), dtype=jnp.float32)

    # 1) Plain forward (shared 2-D context), exact match.
    prompts = jax.block_until_ready(
        prompt_learner_forward(token_prefix, context, token_suffix, "end"))
    assert prompts.shape == (num_classes, seq_len, context_dim), prompts.shape
    assert prompts.dtype == jnp.float32
    assert bool(jnp.array_equal(prompts, reference_forward(token_prefix, context, token_suffix)))

    # 2) Class-specific-context (CSC) path.
    csc_context = 0.02 * jax.random.normal(k_csc, (num_classes, n_ctx, context_dim), jnp.float32)
    prompts_csc = jax.block_until_ready(
        prompt_learner_forward(token_prefix, csc_context, token_suffix))
    assert bool(jnp.array_equal(prompts_csc,
                                reference_forward(token_prefix, csc_context, token_suffix)))

    # 3) Mixed dtype: bf16 frozen embeddings + f32 learnable context.
    prefix_bf16 = token_prefix.astype(jnp.bfloat16)
    suffix_bf16 = token_suffix.astype(jnp.bfloat16)
    prompts_bf16 = jax.block_until_ready(
        prompt_learner_forward(prefix_bf16, context, suffix_bf16))
    assert prompts_bf16.dtype == jnp.bfloat16
    assert bool(jnp.array_equal(prompts_bf16,
                                reference_forward(prefix_bf16, context, suffix_bf16)))

    # 4) Non-divisible class count with a forced small class block (remainder masking).
    c5 = 5
    prefix5 = jax.random.normal(k_pre5, (c5, 1, context_dim), jnp.float32)
    suffix5 = jax.random.normal(k_suf5, (c5, suffix_len, context_dim), jnp.float32)
    prompts5 = jax.block_until_ready(
        assemble_prompts(prefix5, context, suffix5, class_block=2))
    assert bool(jnp.array_equal(prompts5, reference_forward(prefix5, context, suffix5)))

    # 5) Persistent-buffer fast path: frozen rows written exactly once at init,
    #    then per-step ctx-rows-only updates (buffer is donated each step).
    prompts_buf = assemble_prompts(token_prefix, context, token_suffix)     # init
    ctx_step1 = 0.02 * jax.random.normal(k_new, (n_ctx, context_dim), jnp.float32)
    prompts_buf = jax.block_until_ready(
        prompt_learner_forward(token_prefix, ctx_step1, token_suffix, prompts_buffer=prompts_buf))
    assert bool(jnp.array_equal(prompts_buf,
                                reference_forward(token_prefix, ctx_step1, token_suffix)))
    # Chain a second step with a class-specific (CSC) context.
    prompts_buf = jax.block_until_ready(
        prompt_learner_forward(token_prefix, csc_context, token_suffix, prompts_buffer=prompts_buf))
    assert bool(jnp.array_equal(prompts_buf,
                                reference_forward(token_prefix, csc_context, token_suffix)))

    # 6) Persistent path with non-divisible C (exercises the clamped-remainder DMA).
    prompts5_buf = assemble_prompts(prefix5, context, suffix5)
    ctx5_new = 0.02 * jax.random.normal(k_new5, (n_ctx, context_dim), jnp.float32)
    prompts5_buf = jax.block_until_ready(update_context_rows(prompts5_buf, ctx5_new))
    assert bool(jnp.array_equal(prompts5_buf, reference_forward(prefix5, ctx5_new, suffix5)))

    # 7) Persistent path with bf16 frozen buffer + f32 ctx (in-kernel cast in the slab).
    prompts_bf16_buf = assemble_prompts(prefix_bf16, context, suffix_bf16)
    prompts_bf16_buf = jax.block_until_ready(update_context_rows(prompts_bf16_buf, ctx_step1))
    assert bool(jnp.array_equal(prompts_bf16_buf,
                                reference_forward(prefix_bf16, ctx_step1, suffix_bf16)))

    print("KERNEL_OK")
</pallas_src>

<mosaic_0001>
module attributes {stable_mosaic.version = 11 : i64} {
  func.func @_assemble_kernel(%arg0: i32, %arg1: memref<2x1x128xf32, #tpu.memory_space<vmem>>, %arg2: memref<1x4x128xf32, #tpu.memory_space<vmem>>, %arg3: memref<2x11x128xf32, #tpu.memory_space<vmem>>, %arg4: memref<2x16x128xf32, #tpu.memory_space<vmem>>) attributes {dimension_semantics = [#tpu.dimension_semantics<parallel>], iteration_bounds = array<i64: 2>, scalar_prefetch = 0 : i64, scratch_operands = 0 : i64, tpu.core_type = #tpu.core_type<tc>, window_params = [{transform_indices = @transform_0, window_bounds = array<i64: 2, 1, 128>}, {pipeline_mode = #tpu.pipeline_mode<synchronous>, transform_indices = @transform_1, window_bounds = array<i64: 1, 4, 128>}, {transform_indices = @transform_2, window_bounds = array<i64: 2, 11, 128>}, {transform_indices = @transform_3, window_bounds = array<i64: 2, 16, 128>}]} {
    %c0 = arith.constant 0 : index
    %c0_0 = arith.constant 0 : index
    %c0_1 = arith.constant 0 : index
    %0 = vector.load %arg1[%c0, %c0_0, %c0_1] : memref<2x1x128xf32, #tpu.memory_space<vmem>>, vector<2x1x128xf32>
    %c0_2 = arith.constant 0 : index
    %c0_3 = arith.constant 0 : index
    %c0_4 = arith.constant 0 : index
    %1 = vector.load %arg4[%c0_2, %c0_3, %c0_4] : memref<2x16x128xf32, #tpu.memory_space<vmem>>, vector<2x1x128xf32>
    tpu.vector_store %arg4[%c0_2, %c0_3, %c0_4], %0 {strides = array<i32>} : memref<2x16x128xf32, #tpu.memory_space<vmem>>, vector<2x1x128xf32>,
    %c0_5 = arith.constant 0 : index
    %c0_6 = arith.constant 0 : index
    %c0_7 = arith.constant 0 : index
    %2 = vector.load %arg2[%c0_5, %c0_6, %c0_7] : memref<1x4x128xf32, #tpu.memory_space<vmem>>, vector<1x4x128xf32>
    %3 = vector.shape_cast %2 : vector<1x4x128xf32> to vector<1x4x128xf32>
    %4 = vector.broadcast %3 : vector<1x4x128xf32> to vector<2x4x128xf32>
    %c0_8 = arith.constant 0 : index
    %c1 = arith.constant 1 : index
    %c0_9 = arith.constant 0 : index
    %5 = vector.load %arg4[%c0_8, %c1, %c0_9] : memref<2x16x128xf32, #tpu.memory_space<vmem>>, vector<2x4x128xf32>
    tpu.vector_store %arg4[%c0_8, %c1, %c0_9], %4 {strides = array<i32>} : memref<2x16x128xf32, #tpu.memory_space<vmem>>, vector<2x4x128xf32>,
    %c0_10 = arith.constant 0 : index
    %c0_11 = arith.constant 0 : index
    %c0_12 = arith.constant 0 : index
    %6 = vector.load %arg3[%c0_10, %c0_11, %c0_12] : memref<2x11x128xf32, #tpu.memory_space<vmem>>, vector<2x11x128xf32>
    %c0_13 = arith.constant 0 : index
    %c5 = arith.constant 5 : index
    %c0_14 = arith.constant 0 : index
    %7 = vector.load %arg4[%c0_13, %c5, %c0_14] : memref<2x16x128xf32, #tpu.memory_space<vmem>>, vector<2x11x128xf32>
    tpu.vector_store %arg4[%c0_13, %c5, %c0_14], %6 {strides = array<i32>} : memref<2x16x128xf32, #tpu.memory_space<vmem>>, vector<2x11x128xf32>,
    return
  }
  func.func @transform_0(%arg0: i32) -> (i32, i32, i32) {
    %c0_i32 = arith.constant 0 : i32
    %c0_i32_0 = arith.constant 0 : i32
    %c0_i32_1 = arith.constant 0 : i32
    return %arg0, %c0_i32, %c0_i32_0 : i32, i32, i32
  }
  func.func @transform_1(%arg0: i32) -> (i32, i32, i32) {
    %c0_i32 = arith.constant 0 : i32
    %c0_i32_0 = arith.constant 0 : i32
    %c0_i32_1 = arith.constant 0 : i32
    %c0_i32_2 = arith.constant 0 : i32
    return %c0_i32, %c0_i32_0, %c0_i32_1 : i32, i32, i32
  }
  func.func @transform_2(%arg0: i32) -> (i32, i32, i32) {
    %c0_i32 = arith.constant 0 : i32
    %c0_i32_0 = arith.constant 0 : i32
    %c0_i32_1 = arith.constant 0 : i32
    return %arg0, %c0_i32, %c0_i32_0 : i32, i32, i32
  }
  func.func @transform_3(%arg0: i32) -> (i32, i32, i32) {
    %c0_i32 = arith.constant 0 : i32
    %c0_i32_0 = arith.constant 0 : i32
    %c0_i32_1 = arith.constant 0 : i32
    return %arg0, %c0_i32, %c0_i32_0 : i32, i32, i32
  }
}

</mosaic_0001>

<llo_original>
// kernel: tpu_custom_call.1
$region0: #{tpu_custom_call.1}
  #allocation0 [shape = 'u32[]', space=smem, size = 0x4, offset = 0x4, fixed_abs, tag = 'smem constant byte address 0x4 - core index']
  #allocation1 [shape = 'u32[144,128]{1,0:T(1,128)}', space=vmem, size = 0x12000, scoped, tag = 'internal scratch']
  %s0 = inlined_call_operand.vmem [shape: f32[4,1,128], index: 0, kind: input, shape index: {}]
  %s1 = inlined_call_operand.vmem [shape: f32[1,4,128], index: 1, kind: input, shape index: {}]
  %s2 = inlined_call_operand.vmem [shape: f32[4,11,128], index: 2, kind: input, shape index: {}]
  %s3 = inlined_call_operand.hbm [shape: f32[4,16,128], index: 3, kind: output, shape index: {}]
  %s4 = sld [smem:[#allocation0]]
  $region45: #{tpu_custom_call.1} parent=0
    _
  %s6 = ssub.s32 1, %s4
  %s7 = scalar_select 0, %s6, %s4
  $region1: #{tpu_custom_call.1} parent=0
    #allocation2 [shape = 'u8[32768]{0}', space=vmem, size = 0x8000, scoped, tag = 'output window, operand 0']
    #allocation3 [shape = 's32[2]{0}', space=sflag, size = 0x8, scoped, tag = 'scoped memory for tpu_custom_call.1']
    %8 = vsyncpa [#allocation3], 0
    %s9 = scalar_lea.sflag [#allocation3], 1
    %10 = vsyncpa %s9, 0
    loop: start=0, step=1, limit=4
    $region2: #{tpu_custom_call.1} parent=1 // loop_pre_header
      _
    $region3: #{tpu_custom_call.1} parent=1 // loop_header
      %s12 = sphi 0, %s16
      %p13 = scmp.ge.s32.totalorder %s12, 4
      %s22 = sphi 0, %s24
      %s25 = sphi 0, %s22
      %s26 = sphi 0, %s25
      %s42 = sphi 0, %s26
      %s46 = sphi 0, %s46
      %s48 = sphi 0, %s46
      %s49 = sphi 0, %s48
      %s63 = sphi 0, %s49
      %s69 = sphi 0, %s71
      %s72 = sphi 0, %s69
      %s73 = sphi 0, %s72
      %s89 = sphi 0, %s73
      %s95 = sphi 0, %s97
      %s98 = sphi 0, %s95
      %s99 = sphi 0, %s98
      %s115 = sphi 0, %s99
    $region4: #{tpu_custom_call.1} parent=1 // loop_header_branch
      %15 = sbr.rel (%p13) target = $region8
    $region5: #{tpu_custom_call.1} parent=1 // loop_body
      %s17 = ssub.s32 %s12, 1
      %s18 = ssub.s32 %s12, 2
      %s19 = sadd.s32 %s12, 1
      %s20 = ssub.s32 %s12, %s19
      %p21 = scmp.eq.s32.totalorder %s20, 0
      %s23 = sadd.s32 %s22, 1
      %s24 = scalar_select %p21, %s22, %s23
      %p27 = pneg %p21
      %p28 = scmp.eq.s32.totalorder %s12, 1
      %p29 = por %p27, %p28
      %p30 = scmp.ne.s32.totalorder %s22, %s25
      %p31 = scmp.eq.s32.totalorder %s12, 0
      %p32 = por %p30, %p31
      %p33 = scmp.ne.s32.totalorder %s22, %s25
      %p34 = scmp.eq.s32.totalorder %s17, 1
      %p35 = por %p33, %p34
      %p36 = scmp.ne.s32.totalorder %s25, %s26
      %p37 = scmp.eq.s32.totalorder %s17, 0
      %p38 = por %p36, %p37
      %p39 = scmp.ne.s32.totalorder %s25, %s26
      %p40 = scmp.eq.s32.totalorder %s18, 1
      %p41 = por %p39, %p40
      %p43 = scmp.ne.s32.totalorder %s26, %s42
      %p44 = scmp.eq.s32.totalorder %s18, 0
      %p45 = por %p43, %p44
      %s47 = sadd.s32 %s46, 1
      %p50 = scmp.eq.s32.totalorder %s12, 1
      %p51 = scmp.ne.s32.totalorder %s46, %s48
      %p52 = scmp.eq.s32.totalorder %s12, 0
      %p53 = por %p51, %p52
      %p54 = scmp.ne.s32.totalorder %s46, %s48
      %p55 = scmp.eq.s32.totalorder %s17, 1
      %p56 = por %p54, %p55
      %p57 = scmp.ne.s32.totalorder %s48, %s49
      %p58 = scmp.eq.s32.totalorder %s17, 0
      %p59 = por %p57, %p58
      %p60 = scmp.ne.s32.totalorder %s48, %s49
      %p61 = scmp.eq.s32.totalorder %s18, 1
      %p62 = por %p60, %p61
      %p64 = scmp.ne.s32.totalorder %s49, %s63
      %p65 = scmp.eq.s32.totalorder %s18, 0
      %p66 = por %p64, %p65
      %s67 = ssub.s32 %s12, %s19
      %p68 = scmp.eq.s32.totalorder %s67, 0
      %s70 = sadd.s32 %s69, 1
      %s71 = scalar_select %p68, %s69, %s70
      %p74 = pneg %p68
      %p75 = scmp.eq.s32.totalorder %s12, 1
      %p76 = por %p74, %p75
      %p77 = scmp.ne.s32.totalorder %s69, %s72
      %p78 = scmp.eq.s32.totalorder %s12, 0
      %p79 = por %p77, %p78
      %p80 = scmp.ne.s32.totalorder %s69, %s72
      %p81 = scmp.eq.s32.totalorder %s17, 1
      %p82 = por %p80, %p81
      %p83 = scmp.ne.s32.totalorder %s72, %s73
      %p84 = scmp.eq.s32.totalorder %s17, 0
      %p85 = por %p83, %p84
      %p86 = scmp.ne.s32.totalorder %s72, %s73
      %p87 = scmp.eq.s32.totalorder %s18, 1
      %p88 = por %p86, %p87
      %p90 = scmp.ne.s32.totalorder %s73, %s89
      %p91 = scmp.eq.s32.totalorder %s18, 0
      %p92 = por %p90, %p91
      %s93 = ssub.s32 %s12, %s19
      %p94 = scmp.eq.s32.totalorder %s93, 0
      %s96 = sadd.s32 %s95, 1
      %s97 = scalar_select %p94, %s95, %s96
      %p100 = pneg %p94
      %p101 = scmp.eq.s32.totalorder %s12, 1
      %p102 = por %p100, %p101
      %p103 = scmp.ne.s32.totalorder %s95, %s98
      %p104 = scmp.eq.s32.totalorder %s12, 0
      %p105 = por %p103, %p104
      %p106 = scmp.ne.s32.totalorder %s95, %s98
      %p107 = scmp.eq.s32.totalorder %s17, 1
      %p108 = por %p106, %p107
      %p109 = scmp.ne.s32.totalorder %s98, %s99
      %p110 = scmp.eq.s32.totalorder %s17, 0
      %p111 = por %p109, %p110
      %p112 = scmp.ne.s32.totalorder %s98, %s99
      %p113 = scmp.eq.s32.totalorder %s18, 1
      %p114 = por %p112, %p113
      %p116 = scmp.ne.s32.totalorder %s99, %s115
      %p117 = scmp.eq.s32.totalorder %s18, 0
      %p118 = por %p116, %p117
      %p119 = scmp.le.s32.totalorder 1, %s12
      %p120 = scmp.lt.s32.totalorder %s12, 3
      %p121 = pnand %p119, %p120
      %p122 = pneg %p121
      // Predicated region
      $region9: #{tpu_custom_call.1} parent=5 // pred_check
        _
      $region10: #{tpu_custom_call.1} parent=5 // pred_check_branch
        %124 = sbr.rel (%p121) target = $region12
      $region11: #{tpu_custom_call.1} parent=5 // pred_region
        %s125 = ssub.s32 %s12, 1
        // Predicated region
        $region13: #{tpu_custom_call.1} parent=11 // pred_check
          %p126 = pneg %p59
        $region14: #{tpu_custom_call.1} parent=11 // pred_check_branch
          %128 = sbr.rel (%p126) target = $region16
        $region15: #{tpu_custom_call.1} parent=11 // pred_region
          _
        $region16: #{tpu_custom_call.1} parent=11 // pred_fallthru
          _
      $region12: #{tpu_custom_call.1} parent=5 // pred_fallthru
        _
      %p129 = scmp.lt.s32.totalorder %s12, 2
      // Predicated region
      $region17: #{tpu_custom_call.1} parent=5 // pred_check
        %p130 = pneg %p129
      $region18: #{tpu_custom_call.1} parent=5 // pred_check_branch
        %132 = sbr.rel (%p130) target = $region20
      $region19: #{tpu_custom_call.1} parent=5 // pred_region
        // Predicated region
        $region21: #{tpu_custom_call.1} parent=19 // pred_check
          %p133 = pneg %p32
        $region22: #{tpu_custom_call.1} parent=19 // pred_check_branch
          %135 = sbr.rel (%p133) target = $region24
        $region23: #{tpu_custom_call.1} parent=19 // pred_region
          %s136 = smul.u32 2, %s12
          %p137 = scmp.lt.s32.totalorder %s136, 3
          %s138 = scalar_select %p137, %s136, 3
          %s139 = scalar_lea.vmem %s0, %s138
          %s140 = smul.u32 2, %s12
        $region24: #{tpu_custom_call.1} parent=19 // pred_fallthru
          _
        // Predicated region
        $region25: #{tpu_custom_call.1} parent=19 // pred_check
          %p141 = pneg %p79
        $region26: #{tpu_custom_call.1} parent=19 // pred_check_branch
          %143 = sbr.rel (%p141) target = $region28
        $region27: #{tpu_custom_call.1} parent=19 // pred_region
          %s144 = smul.u32 2, %s12
          %p145 = scmp.lt.s32.totalorder %s144, 3
          %s146 = scalar_select %p145, %s144, 3
          %s147 = smul.addr %s146, 2
          %s148 = smul.addr %s147, 8
          %s149 = scalar_lea.vmem %s2, %s148
          %s150 = smul.u32 2, %s12
        $region28: #{tpu_custom_call.1} parent=19 // pred_fallthru
          _
      $region20: #{tpu_custom_call.1} parent=5 // pred_fallthru
        _
      %p151 = scmp.le.s32.totalorder 1, %s12
      %p152 = scmp.lt.s32.totalorder %s12, 3
      %p153 = pnand %p151, %p152
      %p154 = pneg %p153
      // Predicated region
      $region29: #{tpu_custom_call.1} parent=5 // pred_check
        _
      $region30: #{tpu_custom_call.1} parent=5 // pred_check_branch
        %156 = sbr.rel (%p153) target = $region32
      $region31: #{tpu_custom_call.1} parent=5 // pred_region
        %s157 = ssub.s32 %s12, 1
        %s158 = smul.u32 2, %s17
        %p159 = scmp.lt.s32.totalorder %s158, 3
        %s160 = scalar_select %p159, %s158, 3
        %s161 = scalar_lea.vmem %s0, %s160
        %p162 = pneg %p38
        %p163 = pneg %p35
        %p164 = pneg %p59
        %p165 = pneg %p56
        %s166 = smul.u32 2, %s17
        %p167 = scmp.lt.s32.totalorder %s166, 3
        %s168 = scalar_select %p167, %s166, 3
        %s169 = smul.addr %s168, 2
        %s170 = smul.addr %s169, 8
        %s171 = scalar_lea.vmem %s2, %s170
        %p172 = pneg %p85
        %p173 = pneg %p82
        %p174 = pneg %p111
        %p175 = pneg %p108
        %s176 = sand.u32 %s98, 1
        %s177 = scalar_lea.sflag [#allocation3], %s176
        %s178 = sand.u32 %s98, 1
        %s179 = smul.addr %s178, 32
        %s180 = scalar_lea.vmem [#allocation2], %s179
        %s181 = smul.u32 2, %s17
        %p182 = scmp.lt.s32.totalorder %s181, 3
        %s183 = scalar_select %p182, %s181, 3
        %s184 = scalar_lea.vmem %s0, %s183
        %s185 = smul.u32 2, %s17
        %s186 = smul.u32 2, %s17
        %p187 = scmp.lt.s32.totalorder %s186, 3
        %s188 = scalar_select %p187, %s186, 3
        %s189 = smul.addr %s188, 2
        %s190 = smul.addr %s189, 8
        %s191 = scalar_lea.vmem %s2, %s190
        %s192 = smul.u32 2, %s17
        %s193 = smul.u32 2, %s17
        %v194 = vld [vmem:[%s184] sm:$0x1]
        %v195 = vld [vmem:[%s184 + $0x1] sm:$0x1]
        %196 = vst [vmem:[%s180] sm:$0x1] %v194
        %197 = vst [vmem:[%s180 + $0x10] sm:$0x1] %v195
        %v198 = vld [vmem:[%s1] sm:$0xf]
        %199 = vst [vmem:[%s180 + $0x1] sm:$0xf] %v198
        %200 = vst [vmem:[%s180 + $0x11] sm:$0xf] %v198
        %v201 = vld [vmem:[%s191] sm:$0xff]
        %v202 = vld [vmem:[%s191 + $0x8] sm:$0x7]
        %v203 = vld [vmem:[%s191 + $0x10] sm:$0xff]
        %v204 = vld [vmem:[%s191 + $0x18] sm:$0x7]
        %205 = vst [vmem:[%s180 + $0x5] sm:$0xff] %v201
        %206 = vst [vmem:[%s180 + $0xd] sm:$0x7] %v202
        %207 = vst [vmem:[%s180 + $0x15] sm:$0xff] %v203
        %208 = vst [vmem:[%s180 + $0x1d] sm:$0x7] %v204
        %s209 = sand.u32 %s98, 1
        %s210 = scalar_lea.sflag [#allocation3], %s209
        %s211 = sand.u32 %s98, 1
        %s212 = smul.addr %s211, 32
        %s213 = scalar_lea.vmem [#allocation2], %s212
        // Predicated region
        $region33: #{tpu_custom_call.1} parent=31 // pred_check
          %p214 = pneg %p108
        $region34: #{tpu_custom_call.1} parent=31 // pred_check_branch
          %216 = sbr.rel (%p214) target = $region36
        $region35: #{tpu_custom_call.1} parent=31 // pred_region
          %s217 = smul.u32 2, %s17
          %s219 = ssub.s32 512, 512
          %220 = vsyncadd %s210, %s219
          %s221 = smul.addr %s217, 2
          %s222 = smul.addr %s221, 128
          %s223 = scalar_lea.hbm %s3, %s222
          %s224 = sshll.u32 %s213, 4
          %s225 = int_to_ptr.vmem [resolvable:$true] %s224
          %230 = dma.vmem_to_hbm [thread:$0]  %s225, 512, %s223, %s210, 128, 128, 8
        $region36: #{tpu_custom_call.1} parent=31 // pred_fallthru
          _
      $region32: #{tpu_custom_call.1} parent=5 // pred_fallthru
        _
      %p231 = scmp.le.s32.totalorder 2, %s12
      // Predicated region
      $region37: #{tpu_custom_call.1} parent=5 // pred_check
        %p232 = pneg %p231
      $region38: #{tpu_custom_call.1} parent=5 // pred_check_branch
        %234 = sbr.rel (%p232) target = $region40
      $region39: #{tpu_custom_call.1} parent=5 // pred_region
        %s235 = ssub.s32 %s12, 2
        // Predicated region
        $region41: #{tpu_custom_call.1} parent=39 // pred_check
          %p236 = pneg %p114
        $region42: #{tpu_custom_call.1} parent=39 // pred_check_branch
          %238 = sbr.rel (%p236) target = $region44
        $region43: #{tpu_custom_call.1} parent=39 // pred_region
          %s239 = sand.u32 %s99, 1
          %s240 = scalar_lea.sflag [#allocation3], %s239
          %s241 = sand.u32 %s99, 1
          %s242 = smul.addr %s241, 32
          %s243 = scalar_lea.vmem [#allocation2], %s242
          %244 = dma.done %s240, 512
        $region44: #{tpu_custom_call.1} parent=39 // pred_fallthru
          _
      $region40: #{tpu_custom_call.1} parent=5 // pred_fallthru
        _
    $region6: #{tpu_custom_call.1} parent=1 // loop_footer
      %s16 = sadd.s32 1, %s12
    $region7: #{tpu_custom_call.1} parent=1 // loop_footer_branch
      %11 = sbr.rel target = $region3
    $region8: #{tpu_custom_call.1} parent=1 // loop_exit
      _
    %245 = vsyncpa [#allocation3], 1
    %s246 = scalar_lea.sflag [#allocation3], 1
    %247 = vsyncpa %s246, 1

</llo_original>
